<compile_context>
chip_gen: v6e
topology: v6e:2x2x1
jax: 0.10.0
libtpu: 0.0.40
codegen_flags: <defaults>
</compile_context>

<pallas_src>
import functools
from typing import NamedTuple

import jax
import jax.numpy as jnp
from jax.experimental import pallas as pl
from jax.experimental.pallas import tpu as pltpu


_LANE = 128


def _round_up(x, m):
    return ((x + m - 1) // m) * m


def _cdiv(a, b):
    return (a + b - 1) // b


# ---------------------------------------------------------------------------
# One-time hardware / capability detection (cached; zero per-call cost).
# ---------------------------------------------------------------------------
@functools.lru_cache(maxsize=None)
def _tpu_caps():
    """Returns (vmem_budget, vmem_limit, has_bf16_vpu, default_batch_tile)."""
    vmem_cap = 64 * 1024 * 1024          # conservative default = v7x per-TC VMEM
    try:
        vmem_cap = int(pltpu.get_tpu_info().vmem_capacity_bytes)
    except Exception:
        pass
    has_bf16_vpu = True
    try:
        kind = jax.devices()[0].device_kind.lower()
        if any(g in kind for g in ("v2", "v3", "v4", "v5")):
            has_bf16_vpu = False         # no bf16 VALU before v6e
    except Exception:
        pass
    budget = int(vmem_cap * 0.70)        # resident working-set target
    limit = int(vmem_cap * 0.78)         # scoped VMEM limit passed to Mosaic
    default_tile = 1024 if vmem_cap >= 96 * 1024 * 1024 else 256
    return budget, limit, has_bf16_vpu, default_tile


@functools.lru_cache(maxsize=None)
def _supports_single_buffered_blocks():
    """One-time probe: does this JAX/Mosaic accept pl.Buffered(1) on a
    grid-invariant input BlockSpec?  Cached so no per-shape double-compile and
    no blanket except hiding unrelated errors in the real kernel."""
    def _k(x_ref, o_ref):
        o_ref[...] = x_ref[...] + 1.0
    try:
        x = jnp.zeros((8, 128), jnp.float32)
        f = pl.pallas_call(
            _k,
            out_shape=jax.ShapeDtypeStruct((8, 128), jnp.float32),
            grid=(2,),
            in_specs=[pl.BlockSpec((8, 128), lambda i: (0, 0),
                                   pipeline_mode=pl.Buffered(1))],
            out_specs=pl.BlockSpec((8, 128), lambda i: (0, 0)),
        )
        jax.block_until_ready(f(x))
        return True
    except Exception:
        return False


# ---------------------------------------------------------------------------
# Kernel
# ---------------------------------------------------------------------------
def _mlp_kernel(x_ref, w1_ref, b1_ref, w2_ref, b2_ref, w3_ref, b3_ref, o_ref,
                *, fast_epilogue):
    cdt = w1_ref.dtype  # compute dtype (bf16 or f32); MXU accumulation is f32

    def hidden(h, w_ref, b_ref):
        acc = jnp.dot(h, w_ref[...], preferred_element_type=jnp.float32)
        if fast_epilogue:
            # bf16 VALU epilogue (v6e/v7x): halves vreg traffic on bias + ReLU.
            return jnp.maximum(acc.astype(cdt) + b_ref[...].astype(cdt), 0)
        return jnp.maximum(acc + b_ref[...], 0.0).astype(cdt)

    h = hidden(x_ref[...], w1_ref, b1_ref)          # layer 1 + ReLU
    h = hidden(h, w2_ref, b2_ref)                   # layer 2 + ReLU
    # Final layer: no activation; keep the bias add in f32 for output precision.
    acc = jnp.dot(h, w3_ref[...], preferred_element_type=jnp.float32)
    o_ref[...] = (acc + b3_ref[...]).astype(o_ref.dtype)


# ---------------------------------------------------------------------------
# Parameter preparation (pad + cast ONCE, at model-load time)
# ---------------------------------------------------------------------------
class PreparedMLPParams(NamedTuple):
    w1: jax.Array
    b1: jax.Array
    w2: jax.Array
    b2: jax.Array
    w3: jax.Array
    b3: jax.Array
    out_dim: int


def prepare_mlp_params(w1, b1, w2, b2, w3, b3, *, compute_dtype=jnp.bfloat16):
    """Zero-pad every feature dim to a multiple of 128 (lane-dense; zeros are
    inert through Linear+ReLU) and cast weights to the compute dtype, once."""
    cdt = jnp.dtype(compute_dtype)

    def pad2(a, rows, cols, dt):
        a = jnp.asarray(a)
        if a.ndim == 1:
            a = a.reshape(1, -1)
        return jnp.pad(a, ((0, rows - a.shape[0]),
                           (0, cols - a.shape[1]))).astype(dt)

    in_dim, h1 = w1.shape
    h2 = w2.shape[1]
    out_dim = w3.shape[1]
    in_p, h1_p, h2_p, out_p = (_round_up(d, _LANE)
                               for d in (in_dim, h1, h2, out_dim))
    return PreparedMLPParams(
        w1=pad2(w1, in_p, h1_p, cdt), b1=pad2(b1, 1, h1_p, jnp.float32),
        w2=pad2(w2, h1_p, h2_p, cdt), b2=pad2(b2, 1, h2_p, jnp.float32),
        w3=pad2(w3, h2_p, out_p, cdt), b3=pad2(b3, 1, out_p, jnp.float32),
        out_dim=int(out_dim))


# ---------------------------------------------------------------------------
# Forward
# ---------------------------------------------------------------------------
@functools.partial(
    jax.jit,
    static_argnames=("out_dim", "batch_tile", "single_buffer", "fast_epilogue"))
def _mlp_forward_impl(x, w1, b1, w2, b2, w3, b3, *, out_dim, batch_tile,
                      single_buffer, fast_epilogue):
    budget, vmem_limit, _, _ = _tpu_caps()
    B, in_dim = x.shape
    in_p, h1_p = w1.shape
    h2_p = w2.shape[1]
    out_p = w3.shape[1]
    cdt = w1.dtype
    wbytes = cdt.itemsize
    out_dtype = x.dtype

    # --- batch tile selection: balanced (minimal padding), >=2 grid steps
    #     whenever possible (keeps both v7x TensorCores busy), sublane
    #     granularity matched to the compute dtype (16 bf16 / 8 f32).
    gran = 16 if wbytes == 2 else 8
    n_buf = 1 if single_buffer else 2

    def est_bytes(tile):
        wb = n_buf * wbytes * (in_p * h1_p + h1_p * h2_p + h2_p * out_p)
        bb = n_buf * 4 * (h1_p + h2_p + out_p)
        io = 2 * tile * (in_p * wbytes + out_p * out_dtype.itemsize)  # dbl-buffered
        interm = 2 * tile * max(h1_p, h2_p) * 4                        # f32 activations
        return wb + bb + io + interm

    if est_bytes(gran) > budget:
        # TODO(synk): add a K/N-tiled (reduction-axis, accumulator-scratch)
        # variant for MLPs whose weights alone exceed VMEM; not needed here.
        raise ValueError(
            "MLP weights too large for the single-pass VMEM-resident kernel "
            f"(need > {budget} bytes of VMEM)")

    min_steps = 2 if B > 2 * gran else 1
    n_steps = max(min_steps, _cdiv(B, batch_tile))
    tile = _round_up(_cdiv(B, n_steps), gran)
    while tile > gran and est_bytes(tile) > budget:
        tile = max(gran, _round_up(tile // 2, gran))
    # Rebalance so the last tile is not mostly padding (never increases tile).
    tile = _round_up(_cdiv(B, _cdiv(B, tile)), gran)
    B_p = _round_up(B, tile)
    grid = (B_p // tile,)

    # Only the activation is padded/cast per call; weights were prepared once.
    x_p = jnp.pad(x, ((0, B_p - B), (0, in_p - in_dim))).astype(cdt)

    if single_buffer:
        def wspec(shape):
            return pl.BlockSpec(shape, lambda i: (0, 0),
                                pipeline_mode=pl.Buffered(1))
    else:
        def wspec(shape):
            return pl.BlockSpec(shape, lambda i: (0, 0))

    flops = 2 * B_p * (in_p * h1_p + h1_p * h2_p + h2_p * out_p)
    bytes_accessed = (
        B_p * in_p * wbytes
        + (w1.size + w2.size + w3.size) * wbytes
        + (b1.size + b2.size + b3.size) * 4
        + B_p * out_p * out_dtype.itemsize)

    out = pl.pallas_call(
        functools.partial(_mlp_kernel, fast_epilogue=fast_epilogue),
        out_shape=jax.ShapeDtypeStruct((B_p, out_p), out_dtype),
        grid_spec=pltpu.PrefetchScalarGridSpec(
            num_scalar_prefetch=0,
            grid=grid,
            in_specs=[
                pl.BlockSpec((tile, in_p), lambda i: (i, 0)),  # x tile
                wspec((in_p, h1_p)),    # w1
                wspec((1, h1_p)),       # b1
                wspec((h1_p, h2_p)),    # w2
                wspec((1, h2_p)),       # b2
                wspec((h2_p, out_p)),   # w3
                wspec((1, out_p)),      # b3
            ],
            out_specs=pl.BlockSpec((tile, out_p), lambda i: (i, 0)),
        ),
        compiler_params=pltpu.CompilerParams(
            dimension_semantics=("parallel",),
            vmem_limit_bytes=vmem_limit,
        ),
        cost_estimate=pl.CostEstimate(
            flops=flops, transcendentals=0, bytes_accessed=bytes_accessed),
    )(x_p, w1, b1, w2, b2, w3, b3)

    # Strip batch / lane padding.
    return out[:B, :out_dim]


def mlp_forward(x, params, *, batch_tile=None):
    """x: [B, input_dim] -> [B, output_dim] (dtype of x).

    `params` is either a PreparedMLPParams (preferred: pad/cast done once at
    load time) or a raw (w1, b1, w2, b2, w3, b3) tuple, which is prepared on
    the fly (re-reads the f32 weights from HBM -- avoid in hot loops)."""
    if not isinstance(params, PreparedMLPParams):
        params = prepare_mlp_params(*params)
    _, _, has_bf16_vpu, default_tile = _tpu_caps()
    if batch_tile is None:
        batch_tile = default_tile
    fast_epilogue = bool(has_bf16_vpu and params.w1.dtype == jnp.bfloat16)
    return _mlp_forward_impl(
        x, params.w1, params.b1, params.w2, params.b2, params.w3, params.b3,
        out_dim=params.out_dim,
        batch_tile=int(batch_tile),
        single_buffer=_supports_single_buffered_blocks(),
        fast_epilogue=fast_epilogue)


# ---------------------------------------------------------------------------
# Parameter init matching the PyTorch module, and a pure-JAX reference.
# ---------------------------------------------------------------------------
def _xavier_normal(key, fan_in, fan_out, gain):
    # torch.nn.init.xavier_normal_ with gain=calculate_gain('relu')=sqrt(2);
    # stored [in, out] (transpose of torch's [out, in]); distribution symmetric.
    std = gain * jnp.sqrt(2.0 / (fan_in + fan_out))
    return std * jax.random.normal(key, (fan_in, fan_out), dtype=jnp.float32)


def _linear_bias(key, fan_in, fan_out):
    # PyTorch nn.Linear default bias init: U(-1/sqrt(fan_in), 1/sqrt(fan_in))
    bound = 1.0 / jnp.sqrt(jnp.float32(fan_in))
    return jax.random.uniform(key, (1, fan_out), dtype=jnp.float32,
                              minval=-bound, maxval=bound)


def init_mlp_params(key, input_dim, output_dim, num_hidden_lyr=2):
    gain = jnp.sqrt(2.0)  # nn.init.calculate_gain('relu')
    layer_channels = [input_dim] + [input_dim] * num_hidden_lyr + [output_dim]
    keys = jax.random.split(key, 2 * (len(layer_channels) - 1))
    params = []
    for li in range(len(layer_channels) - 1):
        fi, fo = layer_channels[li], layer_channels[li + 1]
        params.append(_xavier_normal(keys[2 * li], fi, fo, gain))
        params.append(_linear_bias(keys[2 * li + 1], fi, fo))
    return params


def mlp_reference(x, w1, b1, w2, b2, w3, b3, compute_dtype=jnp.float32):
    """JAX reference mirroring the kernel's cast/accumulate scheme."""
    cdt = jnp.dtype(compute_dtype)

    def lin(a, w, b):
        return jnp.dot(a.astype(cdt), w.astype(cdt),
                       preferred_element_type=jnp.float32) + b.astype(jnp.float32)

    h = jnp.maximum(lin(x, w1, b1), 0.0).astype(cdt)
    h = jnp.maximum(lin(h, w2, b2), 0.0).astype(cdt)
    return lin(h, w3, b3).astype(x.dtype)


if __name__ == "__main__":
    key = jax.random.PRNGKey(0)
    # Small, deliberately non-8/128-multiple shapes to exercise padding paths.
    batch, input_dim, output_dim = 96, 48, 20

    k_x, k_p = jax.random.split(key)
    x = jax.random.normal(k_x, (batch, input_dim), dtype=jnp.float32)
    w1, b1, w2, b2, w3, b3 = init_mlp_params(k_p, input_dim, output_dim)

    # 1) f32 compute path, batch_tile=64 -> balanced 48-row tiles, 2 grid steps.
    p_f32 = prepare_mlp_params(w1, b1, w2, b2, w3, b3, compute_dtype=jnp.float32)
    out_f32 = jax.block_until_ready(mlp_forward(x, p_f32, batch_tile=64))
    ref_f32 = mlp_reference(x, w1, b1, w2, b2, w3, b3, compute_dtype=jnp.float32)
    assert out_f32.shape == (batch, output_dim)
    assert jnp.allclose(out_f32, ref_f32, atol=1e-4, rtol=1e-4), \
        "f32 path mismatch vs JAX reference"

    # 2) default bf16 compute path (MXU-native), params prepared once and
    #    reused across calls (no per-call weight pad/cast HBM pass).
    p_bf16 = prepare_mlp_params(w1, b1, w2, b2, w3, b3)
    out_bf16 = jax.block_until_ready(mlp_forward(x, p_bf16))
    out_bf16_2 = jax.block_until_ready(mlp_forward(x, p_bf16))  # warm repeat
    ref_bf16 = mlp_reference(x, w1, b1, w2, b2, w3, b3, compute_dtype=jnp.bfloat16)
    assert out_bf16.shape == (batch, output_dim)
    assert jnp.allclose(out_bf16, ref_bf16, atol=5e-2, rtol=5e-2), \
        "bf16 path mismatch vs bf16-mirrored JAX reference"
    assert jnp.array_equal(out_bf16, out_bf16_2), "non-deterministic repeat"

    # TODO(synk): bn=True path (BatchNorm1d on the final output) not implemented;
    # the default constructor uses bn=False so this forward matches exactly.
    print("KERNEL_OK")
</pallas_src>

<mosaic_0001>
module attributes {stable_mosaic.version = 11 : i64} {
  func.func @_k(%arg0: i32, %arg1: memref<8x128xf32, #tpu.memory_space<vmem>>, %arg2: memref<8x128xf32, #tpu.memory_space<vmem>>) attributes {dimension_semantics = [#tpu.dimension_semantics<arbitrary>], iteration_bounds = array<i64: 2>, scalar_prefetch = 0 : i64, scratch_operands = 0 : i64, tpu.core_type = #tpu.core_type<tc>, window_params = [{pipeline_mode = #tpu.pipeline_mode<synchronous>, transform_indices = @transform_0, window_bounds = array<i64: 8, 128>}, {pipeline_mode = #tpu.pipeline_mode<synchronous>, transform_indices = @transform_1, window_bounds = array<i64: 8, 128>}]} {
    %c0 = arith.constant 0 : index
    %c0_0 = arith.constant 0 : index
    %0 = vector.load %arg1[%c0, %c0_0] : memref<8x128xf32, #tpu.memory_space<vmem>>, vector<8x128xf32>
    %cst = arith.constant 1.000000e+00 : f32
    %1 = vector.broadcast %cst : f32 to vector<8x128xf32>
    %2 = arith.addf %0, %1 : vector<8x128xf32>
    %c0_1 = arith.constant 0 : index
    %c0_2 = arith.constant 0 : index
    %3 = vector.load %arg2[%c0_1, %c0_2] : memref<8x128xf32, #tpu.memory_space<vmem>>, vector<8x128xf32>
    tpu.vector_store %arg2[%c0_1, %c0_2], %2 {strides = array<i32>} : memref<8x128xf32, #tpu.memory_space<vmem>>, vector<8x128xf32>,
    return
  }
  func.func @transform_0(%arg0: i32) -> (i32, i32) {
    %c0_i32 = arith.constant 0 : i32
    %c0_i32_0 = arith.constant 0 : i32
    %c0_i32_1 = arith.constant 0 : i32
    return %c0_i32, %c0_i32_0 : i32, i32
  }
  func.func @transform_1(%arg0: i32) -> (i32, i32) {
    %c0_i32 = arith.constant 0 : i32
    %c0_i32_0 = arith.constant 0 : i32
    %c0_i32_1 = arith.constant 0 : i32
    return %c0_i32, %c0_i32_0 : i32, i32
  }
}

module attributes {stable_mosaic.version = 11 : i64} {
  func.func @_mlp_kernel(%arg0: i32, %arg1: memref<48x128xf32, #tpu.memory_space<vmem>>, %arg2: memref<128x128xf32, #tpu.memory_space<vmem>>, %arg3: memref<1x128xf32, #tpu.memory_space<vmem>>, %arg4: memref<128x128xf32, #tpu.memory_space<vmem>>, %arg5: memref<1x128xf32, #tpu.memory_space<vmem>>, %arg6: memref<128x128xf32, #tpu.memory_space<vmem>>, %arg7: memref<1x128xf32, #tpu.memory_space<vmem>>, %arg8: memref<48x128xf32, #tpu.memory_space<vmem>>) attributes {dimension_semantics = [#tpu.dimension_semantics<parallel>], iteration_bounds = array<i64: 2>, scalar_prefetch = 0 : i64, scratch_operands = 0 : i64, tpu.core_type = #tpu.core_type<tc>, window_params = [{transform_indices = @transform_0, window_bounds = array<i64: 48, 128>}, {pipeline_mode = #tpu.pipeline_mode<synchronous>, transform_indices = @transform_1, window_bounds = array<i64: 128, 128>}, {pipeline_mode = #tpu.pipeline_mode<synchronous>, transform_indices = @transform_2, window_bounds = array<i64: 1, 128>}, {pipeline_mode = #tpu.pipeline_mode<synchronous>, transform_indices = @transform_3, window_bounds = array<i64: 128, 128>}, {pipeline_mode = #tpu.pipeline_mode<synchronous>, transform_indices = @transform_4, window_bounds = array<i64: 1, 128>}, {pipeline_mode = #tpu.pipeline_mode<synchronous>, transform_indices = @transform_5, window_bounds = array<i64: 128, 128>}, {pipeline_mode = #tpu.pipeline_mode<synchronous>, transform_indices = @transform_6, window_bounds = array<i64: 1, 128>}, {transform_indices = @transform_7, window_bounds = array<i64: 48, 128>}]} {
    %c0 = arith.constant 0 : index
    %c0_0 = arith.constant 0 : index
    %0 = vector.load %arg1[%c0, %c0_0] : memref<48x128xf32, #tpu.memory_space<vmem>>, vector<48x128xf32>
    %c0_1 = arith.constant 0 : index
    %c0_2 = arith.constant 0 : index
    %1 = vector.load %arg2[%c0_1, %c0_2] : memref<128x128xf32, #tpu.memory_space<vmem>>, vector<128x128xf32>
    %cst = arith.constant dense<0.000000e+00> : vector<48x128xf32>
    %2 = tpu.matmul %0, %1, %cst {dimension_numbers = #tpu.dot_dimension_numbers<[1], [0], [0], [1], [0, 0, 1, 1], [], []>} : vector<48x128xf32>, vector<128x128xf32>, vector<48x128xf32> -> vector<48x128xf32>
    %c0_3 = arith.constant 0 : index
    %c0_4 = arith.constant 0 : index
    %3 = vector.load %arg3[%c0_3, %c0_4] : memref<1x128xf32, #tpu.memory_space<vmem>>, vector<1x128xf32>
    %4 = vector.broadcast %3 : vector<1x128xf32> to vector<48x128xf32>
    %5 = arith.addf %2, %4 : vector<48x128xf32>
    %cst_5 = arith.constant 0.000000e+00 : f32
    %6 = vector.broadcast %cst_5 : f32 to vector<48x128xf32>
    %7 = arith.maximumf %5, %6 : vector<48x128xf32>
    %c0_6 = arith.constant 0 : index
    %c0_7 = arith.constant 0 : index
    %8 = vector.load %arg4[%c0_6, %c0_7] : memref<128x128xf32, #tpu.memory_space<vmem>>, vector<128x128xf32>
    %cst_8 = arith.constant dense<0.000000e+00> : vector<48x128xf32>
    %9 = tpu.matmul %7, %8, %cst_8 {dimension_numbers = #tpu.dot_dimension_numbers<[1], [0], [0], [1], [0, 0, 1, 1], [], []>} : vector<48x128xf32>, vector<128x128xf32>, vector<48x128xf32> -> vector<48x128xf32>
    %c0_9 = arith.constant 0 : index
    %c0_10 = arith.constant 0 : index
    %10 = vector.load %arg5[%c0_9, %c0_10] : memref<1x128xf32, #tpu.memory_space<vmem>>, vector<1x128xf32>
    %11 = vector.broadcast %10 : vector<1x128xf32> to vector<48x128xf32>
    %12 = arith.addf %9, %11 : vector<48x128xf32>
    %cst_11 = arith.constant 0.000000e+00 : f32
    %13 = vector.broadcast %cst_11 : f32 to vector<48x128xf32>
    %14 = arith.maximumf %12, %13 : vector<48x128xf32>
    %c0_12 = arith.constant 0 : index
    %c0_13 = arith.constant 0 : index
    %15 = vector.load %arg6[%c0_12, %c0_13] : memref<128x128xf32, #tpu.memory_space<vmem>>, vector<128x128xf32>
    %cst_14 = arith.constant dense<0.000000e+00> : vector<48x128xf32>
    %16 = tpu.matmul %14, %15, %cst_14 {dimension_numbers = #tpu.dot_dimension_numbers<[1], [0], [0], [1], [0, 0, 1, 1], [], []>} : vector<48x128xf32>, vector<128x128xf32>, vector<48x128xf32> -> vector<48x128xf32>
    %c0_15 = arith.constant 0 : index
    %c0_16 = arith.constant 0 : index
    %17 = vector.load %arg7[%c0_15, %c0_16] : memref<1x128xf32, #tpu.memory_space<vmem>>, vector<1x128xf32>
    %18 = vector.broadcast %17 : vector<1x128xf32> to vector<48x128xf32>
    %19 = arith.addf %16, %18 : vector<48x128xf32>
    %c0_17 = arith.constant 0 : index
    %c0_18 = arith.constant 0 : index
    %20 = vector.load %arg8[%c0_17, %c0_18] : memref<48x128xf32, #tpu.memory_space<vmem>>, vector<48x128xf32>
    tpu.vector_store %arg8[%c0_17, %c0_18], %19 {strides = array<i32>} : memref<48x128xf32, #tpu.memory_space<vmem>>, vector<48x128xf32>,
    return
  }
  func.func @transform_0(%arg0: i32) -> (i32, i32) {
    %c0_i32 = arith.constant 0 : i32
    %c0_i32_0 = arith.constant 0 : i32
    return %arg0, %c0_i32 : i32, i32
  }
  func.func @transform_1(%arg0: i32) -> (i32, i32) {
    %c0_i32 = arith.constant 0 : i32
    %c0_i32_0 = arith.constant 0 : i32
    %c0_i32_1 = arith.constant 0 : i32
    return %c0_i32, %c0_i32_0 : i32, i32
  }
  func.func @transform_2(%arg0: i32) -> (i32, i32) {
    %c0_i32 = arith.constant 0 : i32
    %c0_i32_0 = arith.constant 0 : i32
    %c0_i32_1 = arith.constant 0 : i32
    return %c0_i32, %c0_i32_0 : i32, i32
  }
  func.func @transform_3(%arg0: i32) -> (i32, i32) {
    %c0_i32 = arith.constant 0 : i32
    %c0_i32_0 = arith.constant 0 : i32
    %c0_i32_1 = arith.constant 0 : i32
    return %c0_i32, %c0_i32_0 : i32, i32
  }
  func.func @transform_4(%arg0: i32) -> (i32, i32) {
    %c0_i32 = arith.constant 0 : i32
    %c0_i32_0 = arith.constant 0 : i32
    %c0_i32_1 = arith.constant 0 : i32
    return %c0_i32, %c0_i32_0 : i32, i32
  }
  func.func @transform_5(%arg0: i32) -> (i32, i32) {
    %c0_i32 = arith.constant 0 : i32
    %c0_i32_0 = arith.constant 0 : i32
    %c0_i32_1 = arith.constant 0 : i32
    return %c0_i32, %c0_i32_0 : i32, i32
  }
  func.func @transform_6(%arg0: i32) -> (i32, i32) {
    %c0_i32 = arith.constant 0 : i32
    %c0_i32_0 = arith.constant 0 : i32
    %c0_i32_1 = arith.constant 0 : i32
    return %c0_i32, %c0_i32_0 : i32, i32
  }
  func.func @transform_7(%arg0: i32) -> (i32, i32) {
    %c0_i32 = arith.constant 0 : i32
    %c0_i32_0 = arith.constant 0 : i32
    return %arg0, %c0_i32 : i32, i32
  }
}

</mosaic_0001>

<llo_original>
// kernel: tpu_custom_call.1
$region0: #{tpu_custom_call.1}
  #allocation0 [shape = 'u32[]', space=smem, size = 0x4, offset = 0x4, fixed_abs, tag = 'smem constant byte address 0x4 - core index']
  #allocation1 [shape = 'u32[144,128]{1,0:T(1,128)}', space=vmem, size = 0x12000, scoped, tag = 'internal scratch']
  %s0 = inlined_call_operand.hbm [shape: f32[8,128], index: 0, kind: input, shape index: {}]
  %s1 = inlined_call_operand.hbm [shape: f32[8,128], index: 1, kind: output, shape index: {}]
  %s2 = sld [smem:[#allocation0]]
  $region41: #{tpu_custom_call.1} parent=0
    _
  %s4 = ssub.s32 1, %s2
  %s5 = scalar_select 0, %s4, %s2
  $region1: #{tpu_custom_call.1} parent=0
    #allocation2 [shape = 'u8[4096]{0}', space=vmem, size = 0x1000, scoped, tag = 'input window, operand 0, single buffered']
    #allocation3 [shape = 's32[2]{0}', space=sflag, size = 0x8, scoped, tag = 'scoped memory for tpu_custom_call.1']
    #allocation4 [shape = 's32[2]{0}', space=sflag, size = 0x8, scoped, tag = 'scoped memory for tpu_custom_call.1']
    #allocation5 [shape = 'u8[4096]{0}', space=vmem, size = 0x1000, scoped, tag = 'output window, operand 0, single buffered']
    %6 = vsyncpa [#allocation3], 0
    %7 = vsyncpa [#allocation4], 0
    loop: start=0, step=1, limit=4
    $region2: #{tpu_custom_call.1} parent=1 // loop_pre_header
      _
    $region3: #{tpu_custom_call.1} parent=1 // loop_header
      %s9 = sphi 0, %s13
      %p10 = scmp.ge.s32.totalorder %s9, 4
      %s17 = sphi 0, %s17
      %s19 = sphi 0, %s17
      %s20 = sphi 0, %s19
      %s34 = sphi 0, %s20
      %s38 = sphi 0, %s38
      %s40 = sphi 0, %s38
      %s41 = sphi 0, %s40
      %s55 = sphi 0, %s41
    $region4: #{tpu_custom_call.1} parent=1 // loop_header_branch
      %12 = sbr.rel (%p10) target = $region8
    $region5: #{tpu_custom_call.1} parent=1 // loop_body
      %s14 = ssub.s32 %s9, 1
      %s15 = ssub.s32 %s9, 2
      %s16 = sadd.s32 %s9, 1
      %s18 = sadd.s32 %s17, 1
      %p21 = scmp.eq.s32.totalorder %s9, 1
      %p22 = scmp.ne.s32.totalorder %s17, %s19
      %p23 = scmp.eq.s32.totalorder %s9, 0
      %p24 = por %p22, %p23
      %p25 = scmp.ne.s32.totalorder %s17, %s19
      %p26 = scmp.eq.s32.totalorder %s14, 1
      %p27 = por %p25, %p26
      %p28 = scmp.ne.s32.totalorder %s19, %s20
      %p29 = scmp.eq.s32.totalorder %s14, 0
      %p30 = por %p28, %p29
      %p31 = scmp.ne.s32.totalorder %s19, %s20
      %p32 = scmp.eq.s32.totalorder %s15, 1
      %p33 = por %p31, %p32
      %p35 = scmp.ne.s32.totalorder %s20, %s34
      %p36 = scmp.eq.s32.totalorder %s15, 0
      %p37 = por %p35, %p36
      %s39 = sadd.s32 %s38, 1
      %p42 = scmp.eq.s32.totalorder %s9, 1
      %p43 = scmp.ne.s32.totalorder %s38, %s40
      %p44 = scmp.eq.s32.totalorder %s9, 0
      %p45 = por %p43, %p44
      %p46 = scmp.ne.s32.totalorder %s38, %s40
      %p47 = scmp.eq.s32.totalorder %s14, 1
      %p48 = por %p46, %p47
      %p49 = scmp.ne.s32.totalorder %s40, %s41
      %p50 = scmp.eq.s32.totalorder %s14, 0
      %p51 = por %p49, %p50
      %p52 = scmp.ne.s32.totalorder %s40, %s41
      %p53 = scmp.eq.s32.totalorder %s15, 1
      %p54 = por %p52, %p53
      %p56 = scmp.ne.s32.totalorder %s41, %s55
      %p57 = scmp.eq.s32.totalorder %s15, 0
      %p58 = por %p56, %p57
      %p59 = scmp.le.s32.totalorder 1, %s9
      %p60 = scmp.lt.s32.totalorder %s9, 3
      %p61 = pnand %p59, %p60
      %p62 = pneg %p61
      // Predicated region
      $region9: #{tpu_custom_call.1} parent=5 // pred_check
        _
      $region10: #{tpu_custom_call.1} parent=5 // pred_check_branch
        %64 = sbr.rel (%p61) target = $region12
      $region11: #{tpu_custom_call.1} parent=5 // pred_region
        %s65 = ssub.s32 %s9, 1
        // Predicated region
        $region13: #{tpu_custom_call.1} parent=11 // pred_check
          %p66 = pneg %p30
        $region14: #{tpu_custom_call.1} parent=11 // pred_check_branch
          %68 = sbr.rel (%p66) target = $region16
        $region15: #{tpu_custom_call.1} parent=11 // pred_region
          %s70 = ssub.s32 128, 128
          %71 = vsyncadd [#allocation3], %s70
          %s73 = sshll.u32 [#allocation2], 4
          %s74 = int_to_ptr.vmem [resolvable:$true] %s73
          %76 = dma.hbm_to_vmem [thread:$0]  %s0, 128, %s74, [#allocation3]
        $region16: #{tpu_custom_call.1} parent=11 // pred_fallthru
          _
      $region12: #{tpu_custom_call.1} parent=5 // pred_fallthru
        _
      %p77 = scmp.lt.s32.totalorder %s9, 2
      // Predicated region
      $region17: #{tpu_custom_call.1} parent=5 // pred_check
        %p78 = pneg %p77
      $region18: #{tpu_custom_call.1} parent=5 // pred_check_branch
        %80 = sbr.rel (%p78) target = $region20
      $region19: #{tpu_custom_call.1} parent=5 // pred_region
        _
      $region20: #{tpu_custom_call.1} parent=5 // pred_fallthru
        _
      %p81 = scmp.le.s32.totalorder 1, %s9
      %p82 = scmp.lt.s32.totalorder %s9, 3
      %p83 = pnand %p81, %p82
      %p84 = pneg %p83
      // Predicated region
      $region21: #{tpu_custom_call.1} parent=5 // pred_check
        _
      $region22: #{tpu_custom_call.1} parent=5 // pred_check_branch
        %86 = sbr.rel (%p83) target = $region24
      $region23: #{tpu_custom_call.1} parent=5 // pred_region
        %s87 = ssub.s32 %s9, 1
        // Predicated region
        $region25: #{tpu_custom_call.1} parent=23 // pred_check
          %p88 = pneg %p30
        $region26: #{tpu_custom_call.1} parent=23 // pred_check_branch
          %90 = sbr.rel (%p88) target = $region28
        $region27: #{tpu_custom_call.1} parent=23 // pred_region
          %91 = dma.done [#allocation3], 128
        $region28: #{tpu_custom_call.1} parent=23 // pred_fallthru
          _
        %p92 = pneg %p30
        %p93 = pneg %p27
        %p94 = pneg %p51
        %p95 = pneg %p48
        %v96 = vld [vmem:[#allocation2] sm:$0xff]
        %v97 = vadd.f32 %v96, 1.0
        %98 = vst [vmem:[#allocation5] sm:$0xff] %v97
        // Predicated region
        $region29: #{tpu_custom_call.1} parent=23 // pred_check
          %p99 = pneg %p48
        $region30: #{tpu_custom_call.1} parent=23 // pred_check_branch
          %101 = sbr.rel (%p99) target = $region32
        $region31: #{tpu_custom_call.1} parent=23 // pred_region
          %s103 = ssub.s32 128, 128
          %104 = vsyncadd [#allocation4], %s103
          %s106 = sshll.u32 [#allocation5], 4
          %s107 = int_to_ptr.vmem [resolvable:$true] %s106
          %109 = dma.vmem_to_hbm [thread:$0]  %s107, 128, %s1, [#allocation4]
        $region32: #{tpu_custom_call.1} parent=23 // pred_fallthru
          _
        // Predicated region
        $region33: #{tpu_custom_call.1} parent=23 // pred_check
          %p110 = pneg %p48
        $region34: #{tpu_custom_call.1} parent=23 // pred_check_branch
          %112 = sbr.rel (%p110) target = $region36
        $region35: #{tpu_custom_call.1} parent=23 // pred_region
          %113 = dma.done [#allocation4], 128
        $region36: #{tpu_custom_call.1} parent=23 // pred_fallthru
          _
      $region24: #{tpu_custom_call.1} parent=5 // pred_fallthru
        _
      %p114 = scmp.le.s32.totalorder 2, %s9
      // Predicated region
      $region37: #{tpu_custom_call.1} parent=5 // pred_check
        %p115 = pneg %p114
      $region38: #{tpu_custom_call.1} parent=5 // pred_check_branch
        %117 = sbr.rel (%p115) target = $region40
      $region39: #{tpu_custom_call.1} parent=5 // pred_region
        %s118 = ssub.s32 %s9, 2
      $region40: #{tpu_custom_call.1} parent=5 // pred_fallthru
        _
    $region6: #{tpu_custom_call.1} parent=1 // loop_footer
      %s13 = sadd.s32 1, %s9
    $region7: #{tpu_custom_call.1} parent=1 // loop_footer_branch
      %8 = sbr.rel target = $region3
    $region8: #{tpu_custom_call.1} parent=1 // loop_exit
      _
    %119 = vsyncpa [#allocation3], 1
    %s120 = scalar_lea.sflag [#allocation3], 1
    %121 = vsyncpa %s120, 1
    %122 = vsyncpa [#allocation4], 1
    %s123 = scalar_lea.sflag [#allocation4], 1
    %124 = vsyncpa %s123, 1

// kernel: _mlp_forward_impl.1
$region0: #{_mlp_forward_impl.1}
  #allocation0 [shape = 'u32[]', space=smem, size = 0x4, offset = 0x4, fixed_abs, tag = 'smem constant byte address 0x4 - core index']
  #allocation1 [shape = 'u32[144,128]{1,0:T(1,128)}', space=vmem, size = 0x12000, scoped, tag = 'internal scratch']
  %s0 = inlined_call_operand.vmem [shape: f32[96,128], index: 0, kind: input, shape index: {}]
  %s1 = inlined_call_operand.vmem [shape: f32[128,128], index: 1, kind: input, shape index: {}]
  %s2 = inlined_call_operand.vmem [shape: f32[1,128], index: 2, kind: input, shape index: {}]
  %s3 = inlined_call_operand.vmem [shape: f32[128,128], index: 3, kind: input, shape index: {}]
  %s4 = inlined_call_operand.vmem [shape: f32[1,128], index: 4, kind: input, shape index: {}]
  %s5 = inlined_call_operand.hbm [shape: f32[128,128], index: 5, kind: input, shape index: {}]
  %s6 = inlined_call_operand.vmem [shape: f32[1,128], index: 6, kind: input, shape index: {}]
  %s7 = inlined_call_operand.vmem [shape: f32[96,128], index: 7, kind: output, shape index: {}]
  %s8 = sld [smem:[#allocation0]]
  $region65: #{_mlp_forward_impl.1} parent=0
    _
  %s10 = ssub.s32 1, %s8
  %s11 = scalar_select 0, %s10, %s8
  $region1: #{_mlp_forward_impl.1} parent=0
    #allocation2 [shape = 'u8[65536]{0}', space=vmem, size = 0x10000, scoped, tag = 'input window, operand 5, single buffered']
    #allocation3 [shape = 's32[2]{0}', space=sflag, size = 0x8, scoped, tag = 'scoped memory for _mlp_forward_impl.1']
    %12 = vsyncpa [#allocation3], 0
    loop: start=0, step=1, limit=4
    $region2: #{_mlp_forward_impl.1} parent=1 // loop_pre_header
      _
    $region3: #{_mlp_forward_impl.1} parent=1 // loop_header
      %s14 = sphi 0, %s18
      %p15 = scmp.ge.s32.totalorder %s14, 4
      %s24 = sphi 0, %s26
      %s27 = sphi 0, %s24
      %s28 = sphi 0, %s27
      %s44 = sphi 0, %s28
      %s48 = sphi 0, %s48
      %s50 = sphi 0, %s48
      %s51 = sphi 0, %s50
      %s65 = sphi 0, %s51
      %s69 = sphi 0, %s69
      %s71 = sphi 0, %s69
      %s72 = sphi 0, %s71
      %s86 = sphi 0, %s72
      %s90 = sphi 0, %s90
      %s92 = sphi 0, %s90
      %s93 = sphi 0, %s92
      %s107 = sphi 0, %s93
      %s111 = sphi 0, %s111
      %s113 = sphi 0, %s111
      %s114 = sphi 0, %s113
      %s128 = sphi 0, %s114
      %s132 = sphi 0, %s132
      %s134 = sphi 0, %s132
      %s135 = sphi 0, %s134
      %s149 = sphi 0, %s135
      %s153 = sphi 0, %s153
      %s155 = sphi 0, %s153
      %s156 = sphi 0, %s155
      %s170 = sphi 0, %s156
      %s176 = sphi 0, %s178
      %s179 = sphi 0, %s176
      %s180 = sphi 0, %s179
      %s196 = sphi 0, %s180
    $region4: #{_mlp_forward_impl.1} parent=1 // loop_header_branch
      %17 = sbr.rel (%p15) target = $region8
    $region5: #{_mlp_forward_impl.1} parent=1 // loop_body
      %s19 = ssub.s32 %s14, 1
      %s20 = ssub.s32 %s14, 2
      %s21 = sadd.s32 %s14, 1
      %s22 = ssub.s32 %s14, %s21
      %p23 = scmp.eq.s32.totalorder %s22, 0
      %s25 = sadd.s32 %s24, 1
      %s26 = scalar_select %p23, %s24, %s25
      %p29 = pneg %p23
      %p30 = scmp.eq.s32.totalorder %s14, 1
      %p31 = por %p29, %p30
      %p32 = scmp.ne.s32.totalorder %s24, %s27
      %p33 = scmp.eq.s32.totalorder %s14, 0
      %p34 = por %p32, %p33
      %p35 = scmp.ne.s32.totalorder %s24, %s27
      %p36 = scmp.eq.s32.totalorder %s19, 1
      %p37 = por %p35, %p36
      %p38 = scmp.ne.s32.totalorder %s27, %s28
      %p39 = scmp.eq.s32.totalorder %s19, 0
      %p40 = por %p38, %p39
      %p41 = scmp.ne.s32.totalorder %s27, %s28
      %p42 = scmp.eq.s32.totalorder %s20, 1
      %p43 = por %p41, %p42
      %p45 = scmp.ne.s32.totalorder %s28, %s44
      %p46 = scmp.eq.s32.totalorder %s20, 0
      %p47 = por %p45, %p46
      %s49 = sadd.s32 %s48, 1
      %p52 = scmp.eq.s32.totalorder %s14, 1
      %p53 = scmp.ne.s32.totalorder %s48, %s50
      %p54 = scmp.eq.s32.totalorder %s14, 0
      %p55 = por %p53, %p54
      %p56 = scmp.ne.s32.totalorder %s48, %s50
      %p57 = scmp.eq.s32.totalorder %s19, 1
      %p58 = por %p56, %p57
      %p59 = scmp.ne.s32.totalorder %s50, %s51
      %p60 = scmp.eq.s32.totalorder %s19, 0
      %p61 = por %p59, %p60
      %p62 = scmp.ne.s32.totalorder %s50, %s51
      %p63 = scmp.eq.s32.totalorder %s20, 1
      %p64 = por %p62, %p63
      %p66 = scmp.ne.s32.totalorder %s51, %s65
      %p67 = scmp.eq.s32.totalorder %s20, 0
      %p68 = por %p66, %p67
      %s70 = sadd.s32 %s69, 1
      %p73 = scmp.eq.s32.totalorder %s14, 1
      %p74 = scmp.ne.s32.totalorder %s69, %s71
      %p75 = scmp.eq.s32.totalorder %s14, 0
      %p76 = por %p74, %p75
      %p77 = scmp.ne.s32.totalorder %s69, %s71
      %p78 = scmp.eq.s32.totalorder %s19, 1
      %p79 = por %p77, %p78
      %p80 = scmp.ne.s32.totalorder %s71, %s72
      %p81 = scmp.eq.s32.totalorder %s19, 0
      %p82 = por %p80, %p81
      %p83 = scmp.ne.s32.totalorder %s71, %s72
      %p84 = scmp.eq.s32.totalorder %s20, 1
      %p85 = por %p83, %p84
      %p87 = scmp.ne.s32.totalorder %s72, %s86
      %p88 = scmp.eq.s32.totalorder %s20, 0
      %p89 = por %p87, %p88
      %s91 = sadd.s32 %s90, 1
      %p94 = scmp.eq.s32.totalorder %s14, 1
      %p95 = scmp.ne.s32.totalorder %s90, %s92
      %p96 = scmp.eq.s32.totalorder %s14, 0
      %p97 = por %p95, %p96
      %p98 = scmp.ne.s32.totalorder %s90, %s92
      %p99 = scmp.eq.s32.totalorder %s19, 1
      %p100 = por %p98, %p99
      %p101 = scmp.ne.s32.totalorder %s92, %s93
      %p102 = scmp.eq.s32.totalorder %s19, 0
      %p103 = por %p101, %p102
      %p104 = scmp.ne.s32.totalorder %s92, %s93
      %p105 = scmp.eq.s32.totalorder %s20, 1
      %p106 = por %p104, %p105
      %p108 = scmp.ne.s32.totalorder %s93, %s107
      %p109 = scmp.eq.s32.totalorder %s20, 0
      %p110 = por %p108, %p109
      %s112 = sadd.s32 %s111, 1
      %p115 = scmp.eq.s32.totalorder %s14, 1
      %p116 = scmp.ne.s32.totalorder %s111, %s113
      %p117 = scmp.eq.s32.totalorder %s14, 0
      %p118 = por %p116, %p117
      %p119 = scmp.ne.s32.totalorder %s111, %s113
      %p120 = scmp.eq.s32.totalorder %s19, 1
      %p121 = por %p119, %p120
      %p122 = scmp.ne.s32.totalorder %s113, %s114
      %p123 = scmp.eq.s32.totalorder %s19, 0
      %p124 = por %p122, %p123
      %p125 = scmp.ne.s32.totalorder %s113, %s114
      %p126 = scmp.eq.s32.totalorder %s20, 1
      %p127 = por %p125, %p126
      %p129 = scmp.ne.s32.totalorder %s114, %s128
      %p130 = scmp.eq.s32.totalorder %s20, 0
      %p131 = por %p129, %p130
      %s133 = sadd.s32 %s132, 1
      %p136 = scmp.eq.s32.totalorder %s14, 1
      %p137 = scmp.ne.s32.totalorder %s132, %s134
      %p138 = scmp.eq.s32.totalorder %s14, 0
      %p139 = por %p137, %p138
      %p140 = scmp.ne.s32.totalorder %s132, %s134
      %p141 = scmp.eq.s32.totalorder %s19, 1
      %p142 = por %p140, %p141
      %p143 = scmp.ne.s32.totalorder %s134, %s135
      %p144 = scmp.eq.s32.totalorder %s19, 0
      %p145 = por %p143, %p144
      %p146 = scmp.ne.s32.totalorder %s134, %s135
      %p147 = scmp.eq.s32.totalorder %s20, 1
      %p148 = por %p146, %p147
      %p150 = scmp.ne.s32.totalorder %s135, %s149
      %p151 = scmp.eq.s32.totalorder %s20, 0
      %p152 = por %p150, %p151
      %s154 = sadd.s32 %s153, 1
      %p157 = scmp.eq.s32.totalorder %s14, 1
      %p158 = scmp.ne.s32.totalorder %s153, %s155
      %p159 = scmp.eq.s32.totalorder %s14, 0
      %p160 = por %p158, %p159
      %p161 = scmp.ne.s32.totalorder %s153, %s155
      %p162 = scmp.eq.s32.totalorder %s19, 1
      %p163 = por %p161, %p162
      %p164 = scmp.ne.s32.totalorder %s155, %s156
      %p165 = scmp.eq.s32.totalorder %s19, 0
      %p166 = por %p164, %p165
      %p167 = scmp.ne.s32.totalorder %s155, %s156
      %p168 = scmp.eq.s32.totalorder %s20, 1
      %p169 = por %p167, %p168
      %p171 = scmp.ne.s32.totalorder %s156, %s170
      %p172 = scmp.eq.s32.totalorder %s20, 0
      %p173 = por %p171, %p172
      %s174 = ssub.s32 %s14, %s21
      %p175 = scmp.eq.s32.totalorder %s174, 0
      %s177 = sadd.s32 %s176, 1
      %s178 = scalar_select %p175, %s176, %s177
      %p181 = pneg %p175
      %p182 = scmp.eq.s32.totalorder %s14, 1
      %p183 = por %p181, %p182
      %p184 = scmp.ne.s32.totalorder %s176, %s179
      %p185 = scmp.eq.s32.totalorder %s14, 0
      %p186 = por %p184, %p185
      %p187 = scmp.ne.s32.totalorder %s176, %s179
      %p188 = scmp.eq.s32.totalorder %s19, 1
      %p189 = por %p187, %p188
      %p190 = scmp.ne.s32.totalorder %s179, %s180
      %p191 = scmp.eq.s32.totalorder %s19, 0
      %p192 = por %p190, %p191
      %p193 = scmp.ne.s32.totalorder %s179, %s180
      %p194 = scmp.eq.s32.totalorder %s20, 1
      %p195 = por %p193, %p194
      %p197 = scmp.ne.s32.totalorder %s180, %s196
      %p198 = scmp.eq.s32.totalorder %s20, 0
      %p199 = por %p197, %p198
      %p200 = scmp.le.s32.totalorder 1, %s14
      %p201 = scmp.lt.s32.totalorder %s14, 3
      %p202 = pnand %p200, %p201
      %p203 = pneg %p202
      // Predicated region
      $region9: #{_mlp_forward_impl.1} parent=5 // pred_check
        _
      $region10: #{_mlp_forward_impl.1} parent=5 // pred_check_branch
        %205 = sbr.rel (%p202) target = $region12
      $region11: #{_mlp_forward_impl.1} parent=5 // pred_region
        %s206 = ssub.s32 %s14, 1
        // Predicated region
        $region13: #{_mlp_forward_impl.1} parent=11 // pred_check
          %p207 = pneg %p61
        $region14: #{_mlp_forward_impl.1} parent=11 // pred_check_branch
          %209 = sbr.rel (%p207) target = $region16
        $region15: #{_mlp_forward_impl.1} parent=11 // pred_region
          _
        $region16: #{_mlp_forward_impl.1} parent=11 // pred_fallthru
          _
        // Predicated region
        $region17: #{_mlp_forward_impl.1} parent=11 // pred_check
          %p210 = pneg %p82
        $region18: #{_mlp_forward_impl.1} parent=11 // pred_check_branch
          %212 = sbr.rel (%p210) target = $region20
        $region19: #{_mlp_forward_impl.1} parent=11 // pred_region
          _
        $region20: #{_mlp_forward_impl.1} parent=11 // pred_fallthru
          _
        // Predicated region
        $region21: #{_mlp_forward_impl.1} parent=11 // pred_check
          %p213 = pneg %p103
        $region22: #{_mlp_forward_impl.1} parent=11 // pred_check_branch
          %215 = sbr.rel (%p213) target = $region24
        $region23: #{_mlp_forward_impl.1} parent=11 // pred_region
          _
        $region24: #{_mlp_forward_impl.1} parent=11 // pred_fallthru
          _
        // Predicated region
        $region25: #{_mlp_forward_impl.1} parent=11 // pred_check
          %p216 = pneg %p124
        $region26: #{_mlp_forward_impl.1} parent=11 // pred_check_branch
          %218 = sbr.rel (%p216) target = $region28
        $region27: #{_mlp_forward_impl.1} parent=11 // pred_region
          _
        $region28: #{_mlp_forward_impl.1} parent=11 // pred_fallthru
          _
        // Predicated region
        $region29: #{_mlp_forward_impl.1} parent=11 // pred_check
          %p219 = pneg %p145
        $region30: #{_mlp_forward_impl.1} parent=11 // pred_check_branch
          %221 = sbr.rel (%p219) target = $region32
        $region31: #{_mlp_forward_impl.1} parent=11 // pred_region
          %s223 = ssub.s32 2048, 2048
          %224 = vsyncadd [#allocation3], %s223
          %s225 = sshll.u32 [#allocation2], 4
          %s226 = int_to_ptr.vmem [resolvable:$true] %s225
          %231 = dma.hbm_to_vmem [thread:$0]  %s5, 2048, %s226, [#allocation3], 128, 128, 8
        $region32: #{_mlp_forward_impl.1} parent=11 // pred_fallthru
          _
        // Predicated region
        $region33: #{_mlp_forward_impl.1} parent=11 // pred_check
          %p232 = pneg %p166
        $region34: #{_mlp_forward_impl.1} parent=11 // pred_check_branch
          %234 = sbr.rel (%p232) target = $region36
        $region35: #{_mlp_forward_impl.1} parent=11 // pred_region
          _
        $region36: #{_mlp_forward_impl.1} parent=11 // pred_fallthru
          _
      $region12: #{_mlp_forward_impl.1} parent=5 // pred_fallthru
        _
      %p235 = scmp.lt.s32.totalorder %s14, 2
      // Predicated region
      $region37: #{_mlp_forward_impl.1} parent=5 // pred_check
        %p236 = pneg %p235
      $region38: #{_mlp_forward_impl.1} parent=5 // pred_check_branch
        %238 = sbr.rel (%p236) target = $region40
      $region39: #{_mlp_forward_impl.1} parent=5 // pred_region
        // Predicated region
        $region41: #{_mlp_forward_impl.1} parent=39 // pred_check
          %p239 = pneg %p34
        $region42: #{_mlp_forward_impl.1} parent=39 // pred_check_branch
          %241 = sbr.rel (%p239) target = $region44
        $region43: #{_mlp_forward_impl.1} parent=39 // pred_region
          %s242 = smul.u32 6, %s14
          %p243 = scmp.lt.s32.totalorder %s242, 11
          %s244 = scalar_select %p243, %s242, 11
          %s245 = smul.addr %s244, 8
          %s246 = scalar_lea.vmem %s0, %s245
          %s247 = smul.u32 6, %s14
        $region44: #{_mlp_forward_impl.1} parent=39 // pred_fallthru
          _
      $region40: #{_mlp_forward_impl.1} parent=5 // pred_fallthru
        _
      %p248 = scmp.le.s32.totalorder 1, %s14
      %p249 = scmp.lt.s32.totalorder %s14, 3
      %p250 = pnand %p248, %p249
      %p251 = pneg %p250
      // Predicated region
      $region45: #{_mlp_forward_impl.1} parent=5 // pred_check
        _
      $region46: #{_mlp_forward_impl.1} parent=5 // pred_check_branch
        %253 = sbr.rel (%p250) target = $region48
      $region47: #{_mlp_forward_impl.1} parent=5 // pred_region
        %s254 = ssub.s32 %s14, 1
        // Predicated region
        $region49: #{_mlp_forward_impl.1} parent=47 // pred_check
          %p255 = pneg %p145
        $region50: #{_mlp_forward_impl.1} parent=47 // pred_check_branch
          %257 = sbr.rel (%p255) target = $region52
        $region51: #{_mlp_forward_impl.1} parent=47 // pred_region
          %258 = dma.done [#allocation3], 2048
        $region52: #{_mlp_forward_impl.1} parent=47 // pred_fallthru
          _
        %s259 = smul.u32 6, %s19
        %p260 = scmp.lt.s32.totalorder %s259, 11
        %s261 = scalar_select %p260, %s259, 11
        %s262 = smul.addr %s261, 8
        %s263 = scalar_lea.vmem %s0, %s262
        %p264 = pneg %p40
        %p265 = pneg %p37
        %p266 = pneg %p61
        %p267 = pneg %p58
        %p268 = pneg %p82
        %p269 = pneg %p79
        %p270 = pneg %p103
        %p271 = pneg %p100
        %p272 = pneg %p124
        %p273 = pneg %p121
        %p274 = pneg %p145
        %p275 = pneg %p142
        %p276 = pneg %p166
        %p277 = pneg %p163
        %p278 = pneg %p192
        %p279 = pneg %p189
        %s280 = smul.u32 6, %s19
        %p281 = scmp.lt.s32.totalorder %s280, 11
        %s282 = scalar_select %p281, %s280, 11
        %s283 = smul.addr %s282, 8
        %s284 = scalar_lea.vmem %s7, %s283
        %s285 = smul.u32 6, %s19
        %p286 = scmp.lt.s32.totalorder %s285, 11
        %s287 = scalar_select %p286, %s285, 11
        %s288 = smul.addr %s287, 8
        %s289 = scalar_lea.vmem %s0, %s288
        %s290 = smul.u32 6, %s19
        %s291 = smul.u32 6, %s19
        %p292 = scmp.lt.s32.totalorder %s291, 11
        %s293 = scalar_select %p292, %s291, 11
        %s294 = smul.addr %s293, 8
        %s295 = scalar_lea.vmem %s7, %s294
        %s296 = smul.u32 6, %s19
        %v297 = vld [vmem:[%s289] sm:$0xff]
        %v298 = vld [vmem:[%s289 + $0x8] sm:$0xff]
        %v299 = vld [vmem:[%s289 + $0x10] sm:$0xff]
        %v300 = vld [vmem:[%s289 + $0x18] sm:$0xff]
        %v301 = vld [vmem:[%s289 + $0x20] sm:$0xff]
        %v302 = vld [vmem:[%s289 + $0x28] sm:$0xff]
        %v303 = vld [vmem:[%s1] sm:$0xff]
        %v304 = vld [vmem:[%s1 + $0x8] sm:$0xff]
        %v305 = vld [vmem:[%s1 + $0x10] sm:$0xff]
        %v306 = vld [vmem:[%s1 + $0x18] sm:$0xff]
        %v307 = vld [vmem:[%s1 + $0x20] sm:$0xff]
        %v308 = vld [vmem:[%s1 + $0x28] sm:$0xff]
        %v309 = vld [vmem:[%s1 + $0x30] sm:$0xff]
        %v310 = vld [vmem:[%s1 + $0x38] sm:$0xff]
        %v311 = vld [vmem:[%s1 + $0x40] sm:$0xff]
        %v312 = vld [vmem:[%s1 + $0x48] sm:$0xff]
        %v313 = vld [vmem:[%s1 + $0x50] sm:$0xff]
        %v314 = vld [vmem:[%s1 + $0x58] sm:$0xff]
        %v315 = vld [vmem:[%s1 + $0x60] sm:$0xff]
        %v316 = vld [vmem:[%s1 + $0x68] sm:$0xff]
        %v317 = vld [vmem:[%s1 + $0x70] sm:$0xff]
        %v318 = vld [vmem:[%s1 + $0x78] sm:$0xff]
        %v319 = vld [vmem:[%s2] sm:$0x1]
        %v321 = vlaneseq
        %v322 = vshrl.u32 %v321, 7
        %v323 = vsub.s32 0, %v322
        %v324 = vrot.slane %v319, %v323
        %326 = vmatprep.subr.mxu0 0.0
        %327 = vmatpush1.msra.mxu0 %v318
        %328 = vmatprep.subr.mxu0 0.0
        %329 = vmatpush1.msra.mxu0 %v317
        %330 = vmatprep.subr.mxu0 0.0
        %331 = vmatpush1.msra.mxu0 %v316
        %332 = vmatprep.subr.mxu0 0.0
        %333 = vmatpush1.msra.mxu0 %v315
        %334 = vmatprep.subr.mxu0 0.0
        %335 = vmatpush1.msra.mxu0 %v314
        %336 = vmatprep.subr.mxu0 0.0
        %337 = vmatpush1.msra.mxu0 %v313
        %338 = vmatprep.subr.mxu0 0.0
        %339 = vmatpush1.msra.mxu0 %v312
        %340 = vmatprep.subr.mxu0 0.0
        %341 = vmatpush1.msra.mxu0 %v311
        %342 = vmatprep.subr.mxu0 0.0
        %343 = vmatpush1.msra.mxu0 %v310
        %344 = vmatprep.subr.mxu0 0.0
        %345 = vmatpush1.msra.mxu0 %v309
        %346 = vmatprep.subr.mxu0 0.0
        %347 = vmatpush1.msra.mxu0 %v308
        %348 = vmatprep.subr.mxu0 0.0
        %349 = vmatpush1.msra.mxu0 %v307
        %350 = vmatprep.subr.mxu0 0.0
        %351 = vmatpush1.msra.mxu0 %v306
        %352 = vmatprep.subr.mxu0 0.0
        %353 = vmatpush1.msra.mxu0 %v305
        %354 = vmatprep.subr.mxu0 0.0
        %355 = vmatpush1.msra.mxu0 %v304
        %356 = vmatprep.subr.mxu0 0.0
        %357 = vmatpush1.msra.mxu0 %v303
        %358 = vmatprep.subr.mxu0 0.0
        %359 = vmatpush2.msra.mxu0 0.0
        %360 = vmatprep.subr.mxu0 0.0
        %361 = vmatpush2.msra.mxu0 0.0
        %362 = vmatprep.subr.mxu0 0.0
        %363 = vmatpush2.msra.mxu0 0.0
        %364 = vmatprep.subr.mxu0 0.0
        %365 = vmatpush2.msra.mxu0 0.0
        %366 = vmatprep.subr.mxu0 0.0
        %367 = vmatpush2.msra.mxu0 0.0
        %368 = vmatprep.subr.mxu0 0.0
        %369 = vmatpush2.msra.mxu0 0.0
        %370 = vmatprep.subr.mxu0 0.0
        %371 = vmatpush2.msra.mxu0 0.0
        %372 = vmatprep.subr.mxu0 0.0
        %373 = vmatpush2.msra.mxu0 0.0
        %374 = vmatprep.subr.mxu0 0.0
        %375 = vmatpush2.msra.mxu0 0.0
        %376 = vmatprep.subr.mxu0 0.0
        %377 = vmatpush2.msra.mxu0 0.0
        %378 = vmatprep.subr.mxu0 0.0
        %379 = vmatpush2.msra.mxu0 0.0
        %380 = vmatprep.subr.mxu0 0.0
        %381 = vmatpush2.msra.mxu0 0.0
        %382 = vmatprep.subr.mxu0 0.0
        %383 = vmatpush2.msra.mxu0 0.0
        %384 = vmatprep.subr.mxu0 0.0
        %385 = vmatpush2.msra.mxu0 0.0
        %386 = vmatprep.subr.mxu0 0.0
        %387 = vmatpush2.msra.mxu0 0.0
        %388 = vmatprep.subr.mxu0 0.0
        %389 = vmatpush2.msra.mxu0 0.0
        %390 = vmatprep.mubr.f32.mxu0 0.0
        %391 = vmatmul.mubr.f32.gmra.mxu0 %v297
        %v392 = vpop.f32.mrf.mxu0
        %v393 = vadd.f32 %v324, %v392
        %v394 = vpop.f32.mrf.mxu0
        %395 = vmatprep.mubr.f32.mxu0 0.0
        %396 = vmatmul.mubr.f32.gmra.mxu0 %v298
        %v397 = vpop.f32.mrf.mxu0
        %v398 = vadd.f32 %v324, %v397
        %v399 = vpop.f32.mrf.mxu0
        %400 = vmatprep.mubr.f32.mxu0 0.0
        %401 = vmatmul.mubr.f32.gmra.mxu0 %v299
        %v402 = vpop.f32.mrf.mxu0
        %v403 = vadd.f32 %v324, %v402
        %v404 = vpop.f32.mrf.mxu0
        %405 = vmatprep.mubr.f32.mxu0 0.0
        %406 = vmatmul.mubr.f32.gmra.mxu0 %v300
        %v407 = vpop.f32.mrf.mxu0
        %v408 = vadd.f32 %v324, %v407
        %v409 = vpop.f32.mrf.mxu0
        %410 = vmatprep.mubr.f32.mxu0 0.0
        %411 = vmatmul.mubr.f32.gmra.mxu0 %v301
        %v412 = vpop.f32.mrf.mxu0
        %v413 = vadd.f32 %v324, %v412
        %v414 = vpop.f32.mrf.mxu0
        %415 = vmatprep.mubr.f32.mxu0 0.0
        %416 = vmatmul.mubr.f32.gmra.mxu0 %v302
        %v417 = vpop.f32.mrf.mxu0
        %v418 = vadd.f32 %v324, %v417
        %v419 = vpop.f32.mrf.mxu0
        %420 = vdwg.mxu0
        %v421 = vmax.f32 %v393, 0.0
        %v422 = vmax.f32 %v398, 0.0
        %v423 = vmax.f32 %v403, 0.0
        %v424 = vmax.f32 %v408, 0.0
        %v425 = vmax.f32 %v413, 0.0
        %v426 = vmax.f32 %v418, 0.0
        %v427 = vld [vmem:[%s3] sm:$0xff]
        %v428 = vld [vmem:[%s3 + $0x8] sm:$0xff]
        %v429 = vld [vmem:[%s3 + $0x10] sm:$0xff]
        %v430 = vld [vmem:[%s3 + $0x18] sm:$0xff]
        %v431 = vld [vmem:[%s3 + $0x20] sm:$0xff]
        %v432 = vld [vmem:[%s3 + $0x28] sm:$0xff]
        %v433 = vld [vmem:[%s3 + $0x30] sm:$0xff]
        %v434 = vld [vmem:[%s3 + $0x38] sm:$0xff]
        %v435 = vld [vmem:[%s3 + $0x40] sm:$0xff]
        %v436 = vld [vmem:[%s3 + $0x48] sm:$0xff]
        %v437 = vld [vmem:[%s3 + $0x50] sm:$0xff]
        %v438 = vld [vmem:[%s3 + $0x58] sm:$0xff]
        %v439 = vld [vmem:[%s3 + $0x60] sm:$0xff]
        %v440 = vld [vmem:[%s3 + $0x68] sm:$0xff]
        %v441 = vld [vmem:[%s3 + $0x70] sm:$0xff]
        %v442 = vld [vmem:[%s3 + $0x78] sm:$0xff]
        %v443 = vld [vmem:[%s4] sm:$0x1]
        %v445 = vlaneseq
        %v446 = vshrl.u32 %v445, 7
        %v447 = vsub.s32 0, %v446
        %v448 = vrot.slane %v443, %v447
        %450 = vmatprep.subr.mxu0 0.0
        %451 = vmatpush1.msra.mxu0 %v442
        %452 = vmatprep.subr.mxu0 0.0
        %453 = vmatpush1.msra.mxu0 %v441
        %454 = vmatprep.subr.mxu0 0.0
        %455 = vmatpush1.msra.mxu0 %v440
        %456 = vmatprep.subr.mxu0 0.0
        %457 = vmatpush1.msra.mxu0 %v439
        %458 = vmatprep.subr.mxu0 0.0
        %459 = vmatpush1.msra.mxu0 %v438
        %460 = vmatprep.subr.mxu0 0.0
        %461 = vmatpush1.msra.mxu0 %v437
        %462 = vmatprep.subr.mxu0 0.0
        %463 = vmatpush1.msra.mxu0 %v436
        %464 = vmatprep.subr.mxu0 0.0
        %465 = vmatpush1.msra.mxu0 %v435
        %466 = vmatprep.subr.mxu0 0.0
        %467 = vmatpush1.msra.mxu0 %v434
        %468 = vmatprep.subr.mxu0 0.0
        %469 = vmatpush1.msra.mxu0 %v433
        %470 = vmatprep.subr.mxu0 0.0
        %471 = vmatpush1.msra.mxu0 %v432
        %472 = vmatprep.subr.mxu0 0.0
        %473 = vmatpush1.msra.mxu0 %v431
        %474 = vmatprep.subr.mxu0 0.0
        %475 = vmatpush1.msra.mxu0 %v430
        %476 = vmatprep.subr.mxu0 0.0
        %477 = vmatpush1.msra.mxu0 %v429
        %478 = vmatprep.subr.mxu0 0.0
        %479 = vmatpush1.msra.mxu0 %v428
        %480 = vmatprep.subr.mxu0 0.0
        %481 = vmatpush1.msra.mxu0 %v427
        %482 = vmatprep.subr.mxu0 0.0
        %483 = vmatpush2.msra.mxu0 0.0
        %484 = vmatprep.subr.mxu0 0.0
        %485 = vmatpush2.msra.mxu0 0.0
        %486 = vmatprep.subr.mxu0 0.0
        %487 = vmatpush2.msra.mxu0 0.0
        %488 = vmatprep.subr.mxu0 0.0
        %489 = vmatpush2.msra.mxu0 0.0
        %490 = vmatprep.subr.mxu0 0.0
        %491 = vmatpush2.msra.mxu0 0.0
        %492 = vmatprep.subr.mxu0 0.0
        %493 = vmatpush2.msra.mxu0 0.0
        %494 = vmatprep.subr.mxu0 0.0
        %495 = vmatpush2.msra.mxu0 0.0
        %496 = vmatprep.subr.mxu0 0.0
        %497 = vmatpush2.msra.mxu0 0.0
        %498 = vmatprep.subr.mxu0 0.0
        %499 = vmatpush2.msra.mxu0 0.0
        %500 = vmatprep.subr.mxu0 0.0
        %501 = vmatpush2.msra.mxu0 0.0
        %502 = vmatprep.subr.mxu0 0.0
        %503 = vmatpush2.msra.mxu0 0.0
        %504 = vmatprep.subr.mxu0 0.0
        %505 = vmatpush2.msra.mxu0 0.0
        %506 = vmatprep.subr.mxu0 0.0
        %507 = vmatpush2.msra.mxu0 0.0
        %508 = vmatprep.subr.mxu0 0.0
        %509 = vmatpush2.msra.mxu0 0.0
        %510 = vmatprep.subr.mxu0 0.0
        %511 = vmatpush2.msra.mxu0 0.0
        %512 = vmatprep.subr.mxu0 0.0
        %513 = vmatpush2.msra.mxu0 0.0
        %514 = vmatprep.mubr.f32.mxu0 0.0
        %515 = vmatmul.mubr.f32.gmra.mxu0 %v421
        %v516 = vpop.f32.mrf.mxu0
        %v517 = vadd.f32 %v448, %v516
        %v518 = vpop.f32.mrf.mxu0
        %519 = vmatprep.mubr.f32.mxu0 0.0
        %520 = vmatmul.mubr.f32.gmra.mxu0 %v422
        %v521 = vpop.f32.mrf.mxu0
        %v522 = vadd.f32 %v448, %v521
        %v523 = vpop.f32.mrf.mxu0
        %524 = vmatprep.mubr.f32.mxu0 0.0
        %525 = vmatmul.mubr.f32.gmra.mxu0 %v423
        %v526 = vpop.f32.mrf.mxu0
        %v527 = vadd.f32 %v448, %v526
        %v528 = vpop.f32.mrf.mxu0
        %529 = vmatprep.mubr.f32.mxu0 0.0
        %530 = vmatmul.mubr.f32.gmra.mxu0 %v424
        %v531 = vpop.f32.mrf.mxu0
        %v532 = vadd.f32 %v448, %v531
        %v533 = vpop.f32.mrf.mxu0
        %534 = vmatprep.mubr.f32.mxu0 0.0
        %535 = vmatmul.mubr.f32.gmra.mxu0 %v425
        %v536 = vpop.f32.mrf.mxu0
        %v537 = vadd.f32 %v448, %v536
        %v538 = vpop.f32.mrf.mxu0
        %539 = vmatprep.mubr.f32.mxu0 0.0
        %540 = vmatmul.mubr.f32.gmra.mxu0 %v426
        %v541 = vpop.f32.mrf.mxu0
        %v542 = vadd.f32 %v448, %v541
        %v543 = vpop.f32.mrf.mxu0
        %544 = vdwg.mxu0
        %v545 = vmax.f32 %v517, 0.0
        %v546 = vmax.f32 %v522, 0.0
        %v547 = vmax.f32 %v527, 0.0
        %v548 = vmax.f32 %v532, 0.0
        %v549 = vmax.f32 %v537, 0.0
        %v550 = vmax.f32 %v542, 0.0
        %v551 = vld [vmem:[#allocation2] sm:$0xff]
        %v552 = vld [vmem:[#allocation2 + $0x8] sm:$0xff]
        %v553 = vld [vmem:[#allocation2 + $0x10] sm:$0xff]
        %v554 = vld [vmem:[#allocation2 + $0x18] sm:$0xff]
        %v555 = vld [vmem:[#allocation2 + $0x20] sm:$0xff]
        %v556 = vld [vmem:[#allocation2 + $0x28] sm:$0xff]
        %v557 = vld [vmem:[#allocation2 + $0x30] sm:$0xff]
        %v558 = vld [vmem:[#allocation2 + $0x38] sm:$0xff]
        %v559 = vld [vmem:[#allocation2 + $0x40] sm:$0xff]
        %v560 = vld [vmem:[#allocation2 + $0x48] sm:$0xff]
        %v561 = vld [vmem:[#allocation2 + $0x50] sm:$0xff]
        %v562 = vld [vmem:[#allocation2 + $0x58] sm:$0xff]
        %v563 = vld [vmem:[#allocation2 + $0x60] sm:$0xff]
        %v564 = vld [vmem:[#allocation2 + $0x68] sm:$0xff]
        %v565 = vld [vmem:[#allocation2 + $0x70] sm:$0xff]
        %v566 = vld [vmem:[#allocation2 + $0x78] sm:$0xff]
        %v567 = vld [vmem:[%s6] sm:$0x1]
        %v569 = vlaneseq
        %v570 = vshrl.u32 %v569, 7
        %v571 = vsub.s32 0, %v570
        %v572 = vrot.slane %v567, %v571
        %574 = vmatprep.subr.mxu0 0.0
        %575 = vmatpush1.msra.mxu0 %v566
        %576 = vmatprep.subr.mxu0 0.0
        %577 = vmatpush1.msra.mxu0 %v565
        %578 = vmatprep.subr.mxu0 0.0
        %579 = vmatpush1.msra.mxu0 %v564
        %580 = vmatprep.subr.mxu0 0.0
        %581 = vmatpush1.msra.mxu0 %v563
        %582 = vmatprep.subr.mxu0 0.0
        %583 = vmatpush1.msra.mxu0 %v562
        %584 = vmatprep.subr.mxu0 0.0
        %585 = vmatpush1.msra.mxu0 %v561
        %586 = vmatprep.subr.mxu0 0.0
        %587 = vmatpush1.msra.mxu0 %v560
        %588 = vmatprep.subr.mxu0 0.0
        %589 = vmatpush1.msra.mxu0 %v559
        %590 = vmatprep.subr.mxu0 0.0
        %591 = vmatpush1.msra.mxu0 %v558
        %592 = vmatprep.subr.mxu0 0.0
        %593 = vmatpush1.msra.mxu0 %v557
        %594 = vmatprep.subr.mxu0 0.0
        %595 = vmatpush1.msra.mxu0 %v556
        %596 = vmatprep.subr.mxu0 0.0
        %597 = vmatpush1.msra.mxu0 %v555
        %598 = vmatprep.subr.mxu0 0.0
        %599 = vmatpush1.msra.mxu0 %v554
        %600 = vmatprep.subr.mxu0 0.0
        %601 = vmatpush1.msra.mxu0 %v553
        %602 = vmatprep.subr.mxu0 0.0
        %603 = vmatpush1.msra.mxu0 %v552
        %604 = vmatprep.subr.mxu0 0.0
        %605 = vmatpush1.msra.mxu0 %v551
        %606 = vmatprep.subr.mxu0 0.0
        %607 = vmatpush2.msra.mxu0 0.0
        %608 = vmatprep.subr.mxu0 0.0
        %609 = vmatpush2.msra.mxu0 0.0
        %610 = vmatprep.subr.mxu0 0.0
        %611 = vmatpush2.msra.mxu0 0.0
        %612 = vmatprep.subr.mxu0 0.0
        %613 = vmatpush2.msra.mxu0 0.0
        %614 = vmatprep.subr.mxu0 0.0
        %615 = vmatpush2.msra.mxu0 0.0
        %616 = vmatprep.subr.mxu0 0.0
        %617 = vmatpush2.msra.mxu0 0.0
        %618 = vmatprep.subr.mxu0 0.0
        %619 = vmatpush2.msra.mxu0 0.0
        %620 = vmatprep.subr.mxu0 0.0
        %621 = vmatpush2.msra.mxu0 0.0
        %622 = vmatprep.subr.mxu0 0.0
        %623 = vmatpush2.msra.mxu0 0.0
        %624 = vmatprep.subr.mxu0 0.0
        %625 = vmatpush2.msra.mxu0 0.0
        %626 = vmatprep.subr.mxu0 0.0
        %627 = vmatpush2.msra.mxu0 0.0
        %628 = vmatprep.subr.mxu0 0.0
        %629 = vmatpush2.msra.mxu0 0.0
        %630 = vmatprep.subr.mxu0 0.0
        %631 = vmatpush2.msra.mxu0 0.0
        %632 = vmatprep.subr.mxu0 0.0
        %633 = vmatpush2.msra.mxu0 0.0
        %634 = vmatprep.subr.mxu0 0.0
        %635 = vmatpush2.msra.mxu0 0.0
        %636 = vmatprep.subr.mxu0 0.0
        %637 = vmatpush2.msra.mxu0 0.0
        %638 = vmatprep.mubr.f32.mxu0 0.0
        %639 = vmatmul.mubr.f32.gmra.mxu0 %v545
        %v640 = vpop.f32.mrf.mxu0
        %v641 = vadd.f32 %v572, %v640
        %v642 = vpop.f32.mrf.mxu0
        %643 = vmatprep.mubr.f32.mxu0 0.0
        %644 = vmatmul.mubr.f32.gmra.mxu0 %v546
        %v645 = vpop.f32.mrf.mxu0
        %v646 = vadd.f32 %v572, %v645
        %v647 = vpop.f32.mrf.mxu0
        %648 = vmatprep.mubr.f32.mxu0 0.0
        %649 = vmatmul.mubr.f32.gmra.mxu0 %v547
        %v650 = vpop.f32.mrf.mxu0
        %v651 = vadd.f32 %v572, %v650
        %v652 = vpop.f32.mrf.mxu0
        %653 = vmatprep.mubr.f32.mxu0 0.0
        %654 = vmatmul.mubr.f32.gmra.mxu0 %v548
        %v655 = vpop.f32.mrf.mxu0
        %v656 = vadd.f32 %v572, %v655
        %v657 = vpop.f32.mrf.mxu0
        %658 = vmatprep.mubr.f32.mxu0 0.0
        %659 = vmatmul.mubr.f32.gmra.mxu0 %v549
        %v660 = vpop.f32.mrf.mxu0
        %v661 = vadd.f32 %v572, %v660
        %v662 = vpop.f32.mrf.mxu0
        %663 = vmatprep.mubr.f32.mxu0 0.0
        %664 = vmatmul.mubr.f32.gmra.mxu0 %v550
        %v665 = vpop.f32.mrf.mxu0
        %v666 = vadd.f32 %v572, %v665
        %v667 = vpop.f32.mrf.mxu0
        %668 = vdwg.mxu0
        %669 = vst [vmem:[%s295] sm:$0xff] %v641
        %670 = vst [vmem:[%s295 + $0x8] sm:$0xff] %v646
        %671 = vst [vmem:[%s295 + $0x10] sm:$0xff] %v651
        %672 = vst [vmem:[%s295 + $0x18] sm:$0xff] %v656
        %673 = vst [vmem:[%s295 + $0x20] sm:$0xff] %v661
        %674 = vst [vmem:[%s295 + $0x28] sm:$0xff] %v666
        %s675 = smul.u32 6, %s19
        %p676 = scmp.lt.s32.totalorder %s675, 11
        %s677 = scalar_select %p676, %s675, 11
        %s678 = smul.addr %s677, 8
        %s679 = scalar_lea.vmem %s7, %s678
        // Predicated region
        $region53: #{_mlp_forward_impl.1} parent=47 // pred_check
          %p680 = pneg %p189
        $region54: #{_mlp_forward_impl.1} parent=47 // pred_check_branch
          %682 = sbr.rel (%p680) target = $region56
        $region55: #{_mlp_forward_impl.1} parent=47 // pred_region
          %s683 = smul.u32 6, %s19
        $region56: #{_mlp_forward_impl.1} parent=47 // pred_fallthru
          _
      $region48: #{_mlp_forward_impl.1} parent=5 // pred_fallthru
        _
      %p684 = scmp.le.s32.totalorder 2, %s14
      // Predicated region
      $region57: #{_mlp_forward_impl.1} parent=5 // pred_check
        %p685 = pneg %p684
      $region58: #{_mlp_forward_impl.1} parent=5 // pred_check_branch
        %687 = sbr.rel (%p685) target = $region60
      $region59: #{_mlp_forward_impl.1} parent=5 // pred_region
        %s688 = ssub.s32 %s14, 2
        // Predicated region
        $region61: #{_mlp_forward_impl.1} parent=59 // pred_check
          %p689 = pneg %p195
        $region62: #{_mlp_forward_impl.1} parent=59 // pred_check_branch
          %691 = sbr.rel (%p689) target = $region64
        $region63: #{_mlp_forward_impl.1} parent=59 // pred_region
          %s692 = smul.u32 6, %s20
          %p693 = scmp.lt.s32.totalorder %s692, 11
          %s694 = scalar_select %p693, %s692, 11
          %s695 = smul.addr %s694, 8
          %s696 = scalar_lea.vmem %s7, %s695
        $region64: #{_mlp_forward_impl.1} parent=59 // pred_fallthru
          _
      $region60: #{_mlp_forward_impl.1} parent=5 // pred_fallthru
        _
    $region6: #{_mlp_forward_impl.1} parent=1 // loop_footer
      %s18 = sadd.s32 1, %s14
    $region7: #{_mlp_forward_impl.1} parent=1 // loop_footer_branch
      %13 = sbr.rel target = $region3
    $region8: #{_mlp_forward_impl.1} parent=1 // loop_exit
      _
    %697 = vsyncpa [#allocation3], 1
    %s698 = scalar_lea.sflag [#allocation3], 1
    %699 = vsyncpa %s698, 1

</llo_original>
